<compile_context>
chip_gen: v6e
topology: v6e:2x2x1
jax: 0.10.0
libtpu: 0.0.40
codegen_flags: <defaults>
</compile_context>

<pallas_src>
import jax
import jax.numpy as jnp
from jax.experimental import pallas as pl
from jax.experimental.pallas import tpu as pltpu


# ----------------------------------------------------------------------------
# Pallas kernel: 3x3 conv (pad=1, stride=1, no bias) + ReLU for one image.
# ----------------------------------------------------------------------------
def _conv3x3_relu_kernel(x_ref, w_ref, o_ref, xpad_ref):
    # x_ref   : (1, H, W*Cin)       bf16  one image, rows flattened over (W,Cin)
    # w_ref   : (3, W*Cin, W*Cout)  bf16  banded weights (one band per ky)
    # o_ref   : (1, H, W*Cout)      f32   lane-dense output slab
    # xpad_ref: (H+2, W*Cin)        f32   row-padded scratch (vertical padding)
    _, h, wcin = x_ref.shape

    # Vertical zero padding: two border rows + the image interior.
    zero_row = jnp.zeros((1, wcin), jnp.float32)
    xpad_ref[0:1, :] = zero_row
    xpad_ref[h + 1:h + 2, :] = zero_row
    xpad_ref[1:h + 1, :] = x_ref[0].astype(jnp.float32)

    # Three banded matmuls (ky = 0, 1, 2), f32 accumulation on the MXU.
    acc = jnp.dot(xpad_ref[0:h, :].astype(jnp.bfloat16), w_ref[0],
                  preferred_element_type=jnp.float32)
    for ky in range(1, 3):
        acc += jnp.dot(xpad_ref[ky:ky + h, :].astype(jnp.bfloat16), w_ref[ky],
                       preferred_element_type=jnp.float32)

    # ReLU + lane-dense store.
    o_ref[0] = jnp.maximum(acc, 0.0)


# ----------------------------------------------------------------------------
# Wrapper helpers.
# ----------------------------------------------------------------------------
def _banded_weights(w_oihw, width):
    """(Cout, Cin, 3, 3) -> (3, W*Cin, W*Cout) block-banded matrices.

    M[ky, w'*Cin + ci, x*Cout + co] = weight[co, ci, ky, w' - x + 1]
    when 0 <= w' - x + 1 < 3, else 0 (this encodes the horizontal shift AND
    the horizontal zero padding).
    """
    cout, cin, kh, kw = w_oihw.shape
    w_k = jnp.transpose(w_oihw, (2, 3, 1, 0))            # (ky, kx, Cin, Cout)
    src = jnp.arange(width)[:, None]                      # input column w'
    dst = jnp.arange(width)[None, :]                       # output column x
    kx = src - dst + (kw // 2)                              # (W, W) tap index
    valid = (kx >= 0) & (kx < kw)
    kx_c = jnp.clip(kx, 0, kw - 1)
    band = w_k[:, kx_c] * valid[None, :, :, None, None].astype(w_k.dtype)
    # (ky, w', x, Cin, Cout) -> (ky, w', Cin, x, Cout) -> (ky, W*Cin, W*Cout)
    band = jnp.transpose(band, (0, 1, 3, 2, 4))
    return band.reshape(kh, width * cin, width * cout)


def conv_bn_relu_2d(x_nchw, w_oihw):
    """ConvBnRelu2d defaults: ReLU(conv3x3(x, pad=1, stride=1, bias=False)).

    x: (N, Cin, H, W) f32, w: (Cout, Cin, 3, 3) f32 -> (N, Cout, H, W) f32.
    """
    n, cin, h, w = x_nchw.shape
    cout, cin_w, kh, kw = w_oihw.shape
    assert (cin_w, kh, kw) == (cin, 3, 3), "kernel assumes 3x3, groups=1"

    # NCHW -> (N, H, W*Cin) rows, bf16 (one fused XLA transpose+reshape+cast).
    x_rows = (jnp.transpose(x_nchw, (0, 2, 3, 1))
              .reshape(n, h, w * cin).astype(jnp.bfloat16))
    # Block-banded weights, bf16.
    w_band = _banded_weights(w_oihw, w).astype(jnp.bfloat16)

    wcin, wcout = w * cin, w * cout

    # VMEM working set (double-buffered blocks + scratch), with headroom.
    vmem_bytes = (2 * h * wcin * 2             # input block (bf16)  x2 buffers
                  + 2 * 3 * wcin * wcout * 2   # banded weights (bf16) x2
                  + 2 * h * wcout * 4          # output block (f32)  x2 buffers
                  + (h + 2) * wcin * 4)        # row-padded scratch (f32)
    vmem_limit = int(min(max(4 * vmem_bytes, 16 * 1024 * 1024),
                         60 * 1024 * 1024))    # stay within v7x's 64 MiB VMEM

    out_rows = pl.pallas_call(
        _conv3x3_relu_kernel,
        out_shape=jax.ShapeDtypeStruct((n, h, wcout), jnp.float32),
        grid=(n,),
        in_specs=[
            pl.BlockSpec((1, h, wcin), lambda b: (b, 0, 0)),
            pl.BlockSpec((3, wcin, wcout), lambda b: (0, 0, 0)),
        ],
        out_specs=pl.BlockSpec((1, h, wcout), lambda b: (b, 0, 0)),
        scratch_shapes=[pltpu.VMEM((h + 2, wcin), jnp.float32)],
        compiler_params=pltpu.CompilerParams(
            dimension_semantics=("parallel",),
            vmem_limit_bytes=vmem_limit,
        ),
    )(x_rows, w_band)

    # (N, H, W*Cout) -> (N, H, W, Cout) is a free contiguous reshape.
    return jnp.transpose(out_rows.reshape(n, h, w, cout), (0, 3, 1, 2))


# ----------------------------------------------------------------------------
# Pure-JAX reference (same bf16 rounding of inputs, f32 math) for a self-check.
# ----------------------------------------------------------------------------
def _reference(x_nchw, w_oihw):
    x = x_nchw.astype(jnp.bfloat16).astype(jnp.float32)
    w = w_oihw.astype(jnp.bfloat16).astype(jnp.float32)
    y = jax.lax.conv_general_dilated(
        x, w, window_strides=(1, 1), padding=((1, 1), (1, 1)),
        dimension_numbers=("NCHW", "OIHW", "NCHW"),
        precision=jax.lax.Precision.HIGHEST)
    return jnp.maximum(y, 0.0)


if __name__ == "__main__":
    key = jax.random.PRNGKey(0)
    k_x, k_w = jax.random.split(key)

    # Small shapes consistent with the module (ConvBnRelu2d(4, 8)).
    N, Cin, H, W = 2, 4, 16, 16
    Cout = 8

    x = jax.random.normal(k_x, (N, Cin, H, W), jnp.float32)
    fan_in = Cin * 9
    bound = (1.0 / fan_in) ** 0.5
    weight = jax.random.uniform(k_w, (Cout, Cin, 3, 3), jnp.float32, -bound, bound)

    out = jax.jit(conv_bn_relu_2d)(x, weight)
    out = jax.block_until_ready(out)

    assert out.shape == (N, Cout, H, W), out.shape
    assert bool(jnp.all(jnp.isfinite(out)))

    ref = _reference(x, weight)
    max_err = float(jnp.max(jnp.abs(out - ref)))
    assert jnp.allclose(out, ref, atol=1e-4, rtol=1e-3), max_err

    print("KERNEL_OK")
</pallas_src>

<mosaic_0001>
module attributes {stable_mosaic.version = 11 : i64} {
  func.func @_conv3x3_relu_kernel(%arg0: i32, %arg1: memref<1x16x64xbf16, #tpu.memory_space<vmem>>, %arg2: memref<3x64x128xbf16, #tpu.memory_space<vmem>>, %arg3: memref<1x16x128xf32, #tpu.memory_space<vmem>>, %arg4: memref<18x64xf32, #tpu.memory_space<vmem>>) attributes {dimension_semantics = [#tpu.dimension_semantics<parallel>], iteration_bounds = array<i64: 2>, scalar_prefetch = 0 : i64, scratch_operands = 1 : i64, tpu.core_type = #tpu.core_type<tc>, window_params = [{transform_indices = @transform_0, window_bounds = array<i64: 1, 16, 64>}, {pipeline_mode = #tpu.pipeline_mode<synchronous>, transform_indices = @transform_1, window_bounds = array<i64: 3, 64, 128>}, {transform_indices = @transform_2, window_bounds = array<i64: 1, 16, 128>}]} {
    %cst = arith.constant 0.000000e+00 : f32
    %0 = vector.broadcast %cst : f32 to vector<1x64xf32>
    %c0 = arith.constant 0 : index
    %c0_0 = arith.constant 0 : index
    %1 = vector.load %arg4[%c0, %c0_0] : memref<18x64xf32, #tpu.memory_space<vmem>>, vector<1x64xf32>
    tpu.vector_store %arg4[%c0, %c0_0], %0 {strides = array<i32>} : memref<18x64xf32, #tpu.memory_space<vmem>>, vector<1x64xf32>,
    %c17 = arith.constant 17 : index
    %c0_1 = arith.constant 0 : index
    %2 = vector.load %arg4[%c17, %c0_1] : memref<18x64xf32, #tpu.memory_space<vmem>>, vector<1x64xf32>
    tpu.vector_store %arg4[%c17, %c0_1], %0 {strides = array<i32>} : memref<18x64xf32, #tpu.memory_space<vmem>>, vector<1x64xf32>,
    %c0_2 = arith.constant 0 : index
    %c0_3 = arith.constant 0 : index
    %c0_4 = arith.constant 0 : index
    %3 = vector.load %arg1[%c0_2, %c0_3, %c0_4] : memref<1x16x64xbf16, #tpu.memory_space<vmem>>, vector<1x16x64xbf16>
    %4 = vector.shape_cast %3 : vector<1x16x64xbf16> to vector<16x64xbf16>
    %5 = arith.extf %4 : vector<16x64xbf16> to vector<16x64xf32>
    %c1 = arith.constant 1 : index
    %c0_5 = arith.constant 0 : index
    %6 = vector.load %arg4[%c1, %c0_5] : memref<18x64xf32, #tpu.memory_space<vmem>>, vector<16x64xf32>
    tpu.vector_store %arg4[%c1, %c0_5], %5 {strides = array<i32>} : memref<18x64xf32, #tpu.memory_space<vmem>>, vector<16x64xf32>,
    %c0_6 = arith.constant 0 : index
    %c0_7 = arith.constant 0 : index
    %7 = vector.load %arg4[%c0_6, %c0_7] : memref<18x64xf32, #tpu.memory_space<vmem>>, vector<16x64xf32>
    %8 = arith.truncf %7 : vector<16x64xf32> to vector<16x64xbf16>
    %c0_8 = arith.constant 0 : index
    %c0_9 = arith.constant 0 : index
    %c0_10 = arith.constant 0 : index
    %9 = vector.load %arg2[%c0_8, %c0_9, %c0_10] : memref<3x64x128xbf16, #tpu.memory_space<vmem>>, vector<1x64x128xbf16>
    %10 = vector.shape_cast %9 : vector<1x64x128xbf16> to vector<64x128xbf16>
    %cst_11 = arith.constant dense<0.000000e+00> : vector<16x128xf32>
    %11 = tpu.matmul %8, %10, %cst_11 {dimension_numbers = #tpu.dot_dimension_numbers<[1], [0], [0], [1], [0, 0, 1, 1], [], []>} : vector<16x64xbf16>, vector<64x128xbf16>, vector<16x128xf32> -> vector<16x128xf32>
    %c1_12 = arith.constant 1 : index
    %c0_13 = arith.constant 0 : index
    %12 = vector.load %arg4[%c1_12, %c0_13] : memref<18x64xf32, #tpu.memory_space<vmem>>, vector<16x64xf32>
    %13 = arith.truncf %12 : vector<16x64xf32> to vector<16x64xbf16>
    %c1_14 = arith.constant 1 : index
    %c0_15 = arith.constant 0 : index
    %c0_16 = arith.constant 0 : index
    %14 = vector.load %arg2[%c1_14, %c0_15, %c0_16] : memref<3x64x128xbf16, #tpu.memory_space<vmem>>, vector<1x64x128xbf16>
    %15 = vector.shape_cast %14 : vector<1x64x128xbf16> to vector<64x128xbf16>
    %cst_17 = arith.constant dense<0.000000e+00> : vector<16x128xf32>
    %16 = tpu.matmul %13, %15, %cst_17 {dimension_numbers = #tpu.dot_dimension_numbers<[1], [0], [0], [1], [0, 0, 1, 1], [], []>} : vector<16x64xbf16>, vector<64x128xbf16>, vector<16x128xf32> -> vector<16x128xf32>
    %17 = arith.addf %11, %16 : vector<16x128xf32>
    %c2 = arith.constant 2 : index
    %c0_18 = arith.constant 0 : index
    %18 = vector.load %arg4[%c2, %c0_18] : memref<18x64xf32, #tpu.memory_space<vmem>>, vector<16x64xf32>
    %19 = arith.truncf %18 : vector<16x64xf32> to vector<16x64xbf16>
    %c2_19 = arith.constant 2 : index
    %c0_20 = arith.constant 0 : index
    %c0_21 = arith.constant 0 : index
    %20 = vector.load %arg2[%c2_19, %c0_20, %c0_21] : memref<3x64x128xbf16, #tpu.memory_space<vmem>>, vector<1x64x128xbf16>
    %21 = vector.shape_cast %20 : vector<1x64x128xbf16> to vector<64x128xbf16>
    %cst_22 = arith.constant dense<0.000000e+00> : vector<16x128xf32>
    %22 = tpu.matmul %19, %21, %cst_22 {dimension_numbers = #tpu.dot_dimension_numbers<[1], [0], [0], [1], [0, 0, 1, 1], [], []>} : vector<16x64xbf16>, vector<64x128xbf16>, vector<16x128xf32> -> vector<16x128xf32>
    %23 = arith.addf %17, %22 : vector<16x128xf32>
    %cst_23 = arith.constant 0.000000e+00 : f32
    %24 = vector.broadcast %cst_23 : f32 to vector<16x128xf32>
    %25 = arith.maximumf %23, %24 : vector<16x128xf32>
    %c0_24 = arith.constant 0 : index
    %c0_25 = arith.constant 0 : index
    %c0_26 = arith.constant 0 : index
    %26 = vector.load %arg3[%c0_24, %c0_25, %c0_26] : memref<1x16x128xf32, #tpu.memory_space<vmem>>, vector<1x16x128xf32>
    %27 = vector.shape_cast %26 : vector<1x16x128xf32> to vector<16x128xf32>
    %28 = vector.shape_cast %25 : vector<16x128xf32> to vector<1x16x128xf32>
    tpu.vector_store %arg3[%c0_24, %c0_25, %c0_26], %28 {strides = array<i32>} : memref<1x16x128xf32, #tpu.memory_space<vmem>>, vector<1x16x128xf32>,
    return
  }
  func.func @transform_0(%arg0: i32) -> (i32, i32, i32) {
    %c0_i32 = arith.constant 0 : i32
    %c0_i32_0 = arith.constant 0 : i32
    %c0_i32_1 = arith.constant 0 : i32
    return %arg0, %c0_i32, %c0_i32_0 : i32, i32, i32
  }
  func.func @transform_1(%arg0: i32) -> (i32, i32, i32) {
    %c0_i32 = arith.constant 0 : i32
    %c0_i32_0 = arith.constant 0 : i32
    %c0_i32_1 = arith.constant 0 : i32
    %c0_i32_2 = arith.constant 0 : i32
    return %c0_i32, %c0_i32_0, %c0_i32_1 : i32, i32, i32
  }
  func.func @transform_2(%arg0: i32) -> (i32, i32, i32) {
    %c0_i32 = arith.constant 0 : i32
    %c0_i32_0 = arith.constant 0 : i32
    %c0_i32_1 = arith.constant 0 : i32
    return %arg0, %c0_i32, %c0_i32_0 : i32, i32, i32
  }
}

</mosaic_0001>

<llo_original>
// kernel: conv_bn_relu_2d.1
$region0: #{conv_bn_relu_2d.1}
  #allocation0 [shape = 'u32[]', space=smem, size = 0x4, offset = 0x4, fixed_abs, tag = 'smem constant byte address 0x4 - core index']
  #allocation1 [shape = 'u32[144,128]{1,0:T(1,128)}', space=vmem, size = 0x12000, scoped, tag = 'internal scratch']
  #allocation2 [shape = 'f32[18,64]{1,0:T(8,128)}', space=vmem, size = 0x3000, scoped, tag = 'scratch operand']
  %s0 = inlined_call_operand.vmem [shape: bf16[2,16,64], index: 0, kind: input, shape index: {}]
  %s1 = inlined_call_operand.vmem [shape: bf16[3,64,128], index: 1, kind: input, shape index: {}]
  %s2 = inlined_call_operand.vmem [shape: f32[2,16,128], index: 2, kind: output, shape index: {}]
  %s3 = sld [smem:[#allocation0]]
  $region41: #{conv_bn_relu_2d.1} parent=0
    _
  %s5 = ssub.s32 1, %s3
  %s6 = scalar_select 0, %s5, %s3
  loop: start=0, step=1, limit=4
  $region2: #{conv_bn_relu_2d.1} parent=0 // loop_pre_header
    _
  $region3: #{conv_bn_relu_2d.1} parent=0 // loop_header
    %s8 = sphi 0, %s12
    %p9 = scmp.ge.s32.totalorder %s8, 4
    %s18 = sphi 0, %s20
    %s21 = sphi 0, %s18
    %s22 = sphi 0, %s21
    %s38 = sphi 0, %s22
    %s42 = sphi 0, %s42
    %s44 = sphi 0, %s42
    %s45 = sphi 0, %s44
    %s59 = sphi 0, %s45
    %s65 = sphi 0, %s67
    %s68 = sphi 0, %s65
    %s69 = sphi 0, %s68
    %s85 = sphi 0, %s69
  $region4: #{conv_bn_relu_2d.1} parent=0 // loop_header_branch
    %11 = sbr.rel (%p9) target = $region8
  $region5: #{conv_bn_relu_2d.1} parent=0 // loop_body
    %s13 = ssub.s32 %s8, 1
    %s14 = ssub.s32 %s8, 2
    %s15 = sadd.s32 %s8, 1
    %s16 = ssub.s32 %s8, %s15
    %p17 = scmp.eq.s32.totalorder %s16, 0
    %s19 = sadd.s32 %s18, 1
    %s20 = scalar_select %p17, %s18, %s19
    %p23 = pneg %p17
    %p24 = scmp.eq.s32.totalorder %s8, 1
    %p25 = por %p23, %p24
    %p26 = scmp.ne.s32.totalorder %s18, %s21
    %p27 = scmp.eq.s32.totalorder %s8, 0
    %p28 = por %p26, %p27
    %p29 = scmp.ne.s32.totalorder %s18, %s21
    %p30 = scmp.eq.s32.totalorder %s13, 1
    %p31 = por %p29, %p30
    %p32 = scmp.ne.s32.totalorder %s21, %s22
    %p33 = scmp.eq.s32.totalorder %s13, 0
    %p34 = por %p32, %p33
    %p35 = scmp.ne.s32.totalorder %s21, %s22
    %p36 = scmp.eq.s32.totalorder %s14, 1
    %p37 = por %p35, %p36
    %p39 = scmp.ne.s32.totalorder %s22, %s38
    %p40 = scmp.eq.s32.totalorder %s14, 0
    %p41 = por %p39, %p40
    %s43 = sadd.s32 %s42, 1
    %p46 = scmp.eq.s32.totalorder %s8, 1
    %p47 = scmp.ne.s32.totalorder %s42, %s44
    %p48 = scmp.eq.s32.totalorder %s8, 0
    %p49 = por %p47, %p48
    %p50 = scmp.ne.s32.totalorder %s42, %s44
    %p51 = scmp.eq.s32.totalorder %s13, 1
    %p52 = por %p50, %p51
    %p53 = scmp.ne.s32.totalorder %s44, %s45
    %p54 = scmp.eq.s32.totalorder %s13, 0
    %p55 = por %p53, %p54
    %p56 = scmp.ne.s32.totalorder %s44, %s45
    %p57 = scmp.eq.s32.totalorder %s14, 1
    %p58 = por %p56, %p57
    %p60 = scmp.ne.s32.totalorder %s45, %s59
    %p61 = scmp.eq.s32.totalorder %s14, 0
    %p62 = por %p60, %p61
    %s63 = ssub.s32 %s8, %s15
    %p64 = scmp.eq.s32.totalorder %s63, 0
    %s66 = sadd.s32 %s65, 1
    %s67 = scalar_select %p64, %s65, %s66
    %p70 = pneg %p64
    %p71 = scmp.eq.s32.totalorder %s8, 1
    %p72 = por %p70, %p71
    %p73 = scmp.ne.s32.totalorder %s65, %s68
    %p74 = scmp.eq.s32.totalorder %s8, 0
    %p75 = por %p73, %p74
    %p76 = scmp.ne.s32.totalorder %s65, %s68
    %p77 = scmp.eq.s32.totalorder %s13, 1
    %p78 = por %p76, %p77
    %p79 = scmp.ne.s32.totalorder %s68, %s69
    %p80 = scmp.eq.s32.totalorder %s13, 0
    %p81 = por %p79, %p80
    %p82 = scmp.ne.s32.totalorder %s68, %s69
    %p83 = scmp.eq.s32.totalorder %s14, 1
    %p84 = por %p82, %p83
    %p86 = scmp.ne.s32.totalorder %s69, %s85
    %p87 = scmp.eq.s32.totalorder %s14, 0
    %p88 = por %p86, %p87
    %p89 = scmp.le.s32.totalorder 1, %s8
    %p90 = scmp.lt.s32.totalorder %s8, 3
    %p91 = pnand %p89, %p90
    %p92 = pneg %p91
    // Predicated region
    $region9: #{conv_bn_relu_2d.1} parent=5 // pred_check
      _
    $region10: #{conv_bn_relu_2d.1} parent=5 // pred_check_branch
      %94 = sbr.rel (%p91) target = $region12
    $region11: #{conv_bn_relu_2d.1} parent=5 // pred_region
      %s95 = ssub.s32 %s8, 1
      // Predicated region
      $region13: #{conv_bn_relu_2d.1} parent=11 // pred_check
        %p96 = pneg %p55
      $region14: #{conv_bn_relu_2d.1} parent=11 // pred_check_branch
        %98 = sbr.rel (%p96) target = $region16
      $region15: #{conv_bn_relu_2d.1} parent=11 // pred_region
        _
      $region16: #{conv_bn_relu_2d.1} parent=11 // pred_fallthru
        _
    $region12: #{conv_bn_relu_2d.1} parent=5 // pred_fallthru
      _
    %p99 = scmp.lt.s32.totalorder %s8, 2
    // Predicated region
    $region17: #{conv_bn_relu_2d.1} parent=5 // pred_check
      %p100 = pneg %p99
    $region18: #{conv_bn_relu_2d.1} parent=5 // pred_check_branch
      %102 = sbr.rel (%p100) target = $region20
    $region19: #{conv_bn_relu_2d.1} parent=5 // pred_region
      // Predicated region
      $region21: #{conv_bn_relu_2d.1} parent=19 // pred_check
        %p103 = pneg %p28
      $region22: #{conv_bn_relu_2d.1} parent=19 // pred_check_branch
        %105 = sbr.rel (%p103) target = $region24
      $region23: #{conv_bn_relu_2d.1} parent=19 // pred_region
        %p106 = scmp.lt.s32.totalorder %s8, 1
        %s107 = scalar_select %p106, %s8, 1
        %s108 = smul.addr %s107, 2
        %s109 = smul.addr %s108, 4
        %s110 = scalar_lea.vmem %s0, %s109
      $region24: #{conv_bn_relu_2d.1} parent=19 // pred_fallthru
        _
    $region20: #{conv_bn_relu_2d.1} parent=5 // pred_fallthru
      _
    %p111 = scmp.le.s32.totalorder 1, %s8
    %p112 = scmp.lt.s32.totalorder %s8, 3
    %p113 = pnand %p111, %p112
    %p114 = pneg %p113
    // Predicated region
    $region25: #{conv_bn_relu_2d.1} parent=5 // pred_check
      _
    $region26: #{conv_bn_relu_2d.1} parent=5 // pred_check_branch
      %116 = sbr.rel (%p113) target = $region28
    $region27: #{conv_bn_relu_2d.1} parent=5 // pred_region
      %s117 = ssub.s32 %s8, 1
      %p118 = scmp.lt.s32.totalorder %s13, 1
      %s119 = scalar_select %p118, %s13, 1
      %s120 = smul.addr %s119, 2
      %s121 = smul.addr %s120, 4
      %s122 = scalar_lea.vmem %s0, %s121
      %p123 = pneg %p34
      %p124 = pneg %p31
      %p125 = pneg %p55
      %p126 = pneg %p52
      %p127 = pneg %p81
      %p128 = pneg %p78
      %p129 = scmp.lt.s32.totalorder %s13, 1
      %s130 = scalar_select %p129, %s13, 1
      %s131 = smul.addr %s130, 2
      %s132 = smul.addr %s131, 8
      %s133 = scalar_lea.vmem %s2, %s132
      %p134 = scmp.lt.s32.totalorder %s13, 1
      %s135 = scalar_select %p134, %s13, 1
      %s136 = smul.addr %s135, 2
      %s137 = smul.addr %s136, 4
      %s138 = scalar_lea.vmem %s0, %s137
      %p139 = scmp.lt.s32.totalorder %s13, 1
      %s140 = scalar_select %p139, %s13, 1
      %s141 = smul.addr %s140, 2
      %s142 = smul.addr %s141, 8
      %s143 = scalar_lea.vmem %s2, %s142
      %vm145 = vcmask 516096
      %146 = vst.msk [vmem:[#allocation2] sm:$0x1] %vm145, 0.0
      %147 = vst.msk [vmem:[#allocation2 + $0x11] sm:$0x1] %vm145, 0.0
      %v148 = vld [vmem:[%s138] sm:$0xf]
      %v149 = vld [vmem:[%s138 + $0x4] sm:$0xf]
      %v150 = vunpack.c.l.bf16 %v148
      %v151 = vunpack.c.l.bf16 %v149
      %vm152 = vcmask 523264
      %153 = vst.msk [vmem:[#allocation2 + $0x1] sm:$0xff] %vm152, %v150
      %154 = vst.msk [vmem:[#allocation2 + $0x9] sm:$0xff] %vm152, %v151
      %v155 = vld [vmem:[#allocation2] sm:$0xff]
      %v156 = vld [vmem:[#allocation2 + $0x8] sm:$0xff]
      %v157 = vpack.c.bf16 %v156, %v155
      %v158 = vld [vmem:[%s1] sm:$0xf]
      %v159 = vld [vmem:[%s1 + $0x4] sm:$0xf]
      %v160 = vld [vmem:[%s1 + $0x8] sm:$0xf]
      %v161 = vld [vmem:[%s1 + $0xc] sm:$0xf]
      %v162 = vld [vmem:[%s1 + $0x10] sm:$0xf]
      %v163 = vld [vmem:[%s1 + $0x14] sm:$0xf]
      %v164 = vld [vmem:[%s1 + $0x18] sm:$0xf]
      %v165 = vld [vmem:[%s1 + $0x1c] sm:$0xf]
      %v166 = vld [vmem:[#allocation2 + $0x1] sm:$0xff]
      %v167 = vld [vmem:[#allocation2 + $0x9] sm:$0xff]
      %v168 = vpack.c.bf16 %v167, %v166
      %s169 = scalar_lea.vmem %s1, 32
      %v170 = vld [vmem:[%s169] sm:$0xf]
      %v171 = vld [vmem:[%s169 + $0x4] sm:$0xf]
      %v172 = vld [vmem:[%s169 + $0x8] sm:$0xf]
      %v173 = vld [vmem:[%s169 + $0xc] sm:$0xf]
      %v174 = vld [vmem:[%s169 + $0x10] sm:$0xf]
      %v175 = vld [vmem:[%s169 + $0x14] sm:$0xf]
      %v176 = vld [vmem:[%s169 + $0x18] sm:$0xf]
      %v177 = vld [vmem:[%s169 + $0x1c] sm:$0xf]
      %v186 = vunpack.c.l.b16 %v170
      %v187 = vunpack.c.l.b16 %v171
      %v188 = vunpack.c.l.b16 %v172
      %v189 = vunpack.c.l.b16 %v173
      %v190 = vunpack.c.l.b16 %v174
      %v191 = vunpack.c.l.b16 %v175
      %v192 = vunpack.c.l.b16 %v176
      %v193 = vunpack.c.l.b16 %v177
      %v194 = vpack.c.b16 %v187, %v186
      %v195 = vpack.c.b16 %v189, %v188
      %v196 = vpack.c.b16 %v191, %v190
      %v197 = vpack.c.b16 %v193, %v192
      %v203 = vsel %vm152, %v168, 0
      %205 = vmatprep.subr.bf16.mxu0 0
      %206 = vmatpush1.bf16.msra.mxu0 0
      %207 = vmatprep.subr.bf16.mxu0 0
      %208 = vmatpush1.bf16.msra.mxu0 0
      %209 = vmatprep.subr.bf16.mxu0 0
      %210 = vmatpush1.bf16.msra.mxu0 0
      %211 = vmatprep.subr.bf16.mxu0 0
      %212 = vmatpush1.bf16.msra.mxu0 0
      %213 = vmatprep.subr.bf16.mxu0 0
      %214 = vmatpush1.bf16.msra.mxu0 %v197
      %215 = vmatprep.subr.bf16.mxu0 0
      %216 = vmatpush1.bf16.msra.mxu0 %v196
      %217 = vmatprep.subr.bf16.mxu0 0
      %218 = vmatpush1.bf16.msra.mxu0 %v195
      %219 = vmatprep.subr.bf16.mxu0 0
      %220 = vmatpush1.bf16.msra.mxu0 %v194
      %221 = vmatprep.subr.bf16.mxu0 0
      %222 = vmatpush2.bf16.msra.mxu0 0
      %223 = vmatprep.subr.bf16.mxu0 0
      %224 = vmatpush2.bf16.msra.mxu0 0
      %225 = vmatprep.subr.bf16.mxu0 0
      %226 = vmatpush2.bf16.msra.mxu0 0
      %227 = vmatprep.subr.bf16.mxu0 0
      %228 = vmatpush2.bf16.msra.mxu0 0
      %229 = vmatprep.subr.bf16.mxu0 0
      %230 = vmatpush2.bf16.msra.mxu0 0
      %231 = vmatprep.subr.bf16.mxu0 0
      %232 = vmatpush2.bf16.msra.mxu0 0
      %233 = vmatprep.subr.bf16.mxu0 0
      %234 = vmatpush2.bf16.msra.mxu0 0
      %235 = vmatprep.subr.bf16.mxu0 0
      %236 = vmatpush2.bf16.msra.mxu0 0
      %237 = vmatprep.mubr.bf16.mxu0 0
      %238 = vmatmul.mubr.bf16.gmra.mxu0 %v203
      %v239 = vpop.f32.mrf.mxu0
      %v240 = vadd.f32 0.0, %v239
      %v241 = vpop.f32.mrf.mxu0
      %v242 = vpop.f32.mrf.mxu0
      %v243 = vadd.f32 0.0, %v242
      %v244 = vpop.f32.mrf.mxu0
      %245 = vdwg.mxu0
      %v254 = vunpack.c.l.b16 %v158
      %v255 = vunpack.c.l.b16 %v159
      %v256 = vunpack.c.l.b16 %v160
      %v257 = vunpack.c.l.b16 %v161
      %v258 = vunpack.c.l.b16 %v162
      %v259 = vunpack.c.l.b16 %v163
      %v260 = vunpack.c.l.b16 %v164
      %v261 = vunpack.c.l.b16 %v165
      %v262 = vpack.c.b16 %v255, %v254
      %v263 = vpack.c.b16 %v257, %v256
      %v264 = vpack.c.b16 %v259, %v258
      %v265 = vpack.c.b16 %v261, %v260
      %v271 = vsel %vm152, %v157, 0
      %273 = vmatprep.subr.bf16.mxu0 0
      %274 = vmatpush1.bf16.msra.mxu0 0
      %275 = vmatprep.subr.bf16.mxu0 0
      %276 = vmatpush1.bf16.msra.mxu0 0
      %277 = vmatprep.subr.bf16.mxu0 0
      %278 = vmatpush1.bf16.msra.mxu0 0
      %279 = vmatprep.subr.bf16.mxu0 0
      %280 = vmatpush1.bf16.msra.mxu0 0
      %281 = vmatprep.subr.bf16.mxu0 0
      %282 = vmatpush1.bf16.msra.mxu0 %v265
      %283 = vmatprep.subr.bf16.mxu0 0
      %284 = vmatpush1.bf16.msra.mxu0 %v264
      %285 = vmatprep.subr.bf16.mxu0 0
      %286 = vmatpush1.bf16.msra.mxu0 %v263
      %287 = vmatprep.subr.bf16.mxu0 0
      %288 = vmatpush1.bf16.msra.mxu0 %v262
      %289 = vmatprep.subr.bf16.mxu0 0
      %290 = vmatpush2.bf16.msra.mxu0 0
      %291 = vmatprep.subr.bf16.mxu0 0
      %292 = vmatpush2.bf16.msra.mxu0 0
      %293 = vmatprep.subr.bf16.mxu0 0
      %294 = vmatpush2.bf16.msra.mxu0 0
      %295 = vmatprep.subr.bf16.mxu0 0
      %296 = vmatpush2.bf16.msra.mxu0 0
      %297 = vmatprep.subr.bf16.mxu0 0
      %298 = vmatpush2.bf16.msra.mxu0 0
      %299 = vmatprep.subr.bf16.mxu0 0
      %300 = vmatpush2.bf16.msra.mxu0 0
      %301 = vmatprep.subr.bf16.mxu0 0
      %302 = vmatpush2.bf16.msra.mxu0 0
      %303 = vmatprep.subr.bf16.mxu0 0
      %304 = vmatpush2.bf16.msra.mxu0 0
      %305 = vmatprep.mubr.bf16.mxu0 0
      %306 = vmatmul.mubr.bf16.gmra.mxu0 %v271
      %v307 = vpop.f32.mrf.mxu0
      %v308 = vadd.f32 %v240, %v307
      %v309 = vpop.f32.mrf.mxu0
      %v310 = vpop.f32.mrf.mxu0
      %v311 = vadd.f32 %v243, %v310
      %v312 = vpop.f32.mrf.mxu0
      %313 = vdwg.mxu0
      %v314 = vld [vmem:[#allocation2 + $0x2] sm:$0xff]
      %v315 = vld [vmem:[#allocation2 + $0xa] sm:$0xff]
      %v316 = vpack.c.bf16 %v315, %v314
      %s317 = scalar_lea.vmem %s1, 64
      %v318 = vld [vmem:[%s317] sm:$0xf]
      %v319 = vld [vmem:[%s317 + $0x4] sm:$0xf]
      %v320 = vld [vmem:[%s317 + $0x8] sm:$0xf]
      %v321 = vld [vmem:[%s317 + $0xc] sm:$0xf]
      %v322 = vld [vmem:[%s317 + $0x10] sm:$0xf]
      %v323 = vld [vmem:[%s317 + $0x14] sm:$0xf]
      %v324 = vld [vmem:[%s317 + $0x18] sm:$0xf]
      %v325 = vld [vmem:[%s317 + $0x1c] sm:$0xf]
      %v334 = vunpack.c.l.b16 %v318
      %v335 = vunpack.c.l.b16 %v319
      %v336 = vunpack.c.l.b16 %v320
      %v337 = vunpack.c.l.b16 %v321
      %v338 = vunpack.c.l.b16 %v322
      %v339 = vunpack.c.l.b16 %v323
      %v340 = vunpack.c.l.b16 %v324
      %v341 = vunpack.c.l.b16 %v325
      %v342 = vpack.c.b16 %v335, %v334
      %v343 = vpack.c.b16 %v337, %v336
      %v344 = vpack.c.b16 %v339, %v338
      %v345 = vpack.c.b16 %v341, %v340
      %v351 = vsel %vm152, %v316, 0
      %353 = vmatprep.subr.bf16.mxu0 0
      %354 = vmatpush1.bf16.msra.mxu0 0
      %355 = vmatprep.subr.bf16.mxu0 0
      %356 = vmatpush1.bf16.msra.mxu0 0
      %357 = vmatprep.subr.bf16.mxu0 0
      %358 = vmatpush1.bf16.msra.mxu0 0
      %359 = vmatprep.subr.bf16.mxu0 0
      %360 = vmatpush1.bf16.msra.mxu0 0
      %361 = vmatprep.subr.bf16.mxu0 0
      %362 = vmatpush1.bf16.msra.mxu0 %v345
      %363 = vmatprep.subr.bf16.mxu0 0
      %364 = vmatpush1.bf16.msra.mxu0 %v344
      %365 = vmatprep.subr.bf16.mxu0 0
      %366 = vmatpush1.bf16.msra.mxu0 %v343
      %367 = vmatprep.subr.bf16.mxu0 0
      %368 = vmatpush1.bf16.msra.mxu0 %v342
      %369 = vmatprep.subr.bf16.mxu0 0
      %370 = vmatpush2.bf16.msra.mxu0 0
      %371 = vmatprep.subr.bf16.mxu0 0
      %372 = vmatpush2.bf16.msra.mxu0 0
      %373 = vmatprep.subr.bf16.mxu0 0
      %374 = vmatpush2.bf16.msra.mxu0 0
      %375 = vmatprep.subr.bf16.mxu0 0
      %376 = vmatpush2.bf16.msra.mxu0 0
      %377 = vmatprep.subr.bf16.mxu0 0
      %378 = vmatpush2.bf16.msra.mxu0 0
      %379 = vmatprep.subr.bf16.mxu0 0
      %380 = vmatpush2.bf16.msra.mxu0 0
      %381 = vmatprep.subr.bf16.mxu0 0
      %382 = vmatpush2.bf16.msra.mxu0 0
      %383 = vmatprep.subr.bf16.mxu0 0
      %384 = vmatpush2.bf16.msra.mxu0 0
      %385 = vmatprep.mubr.bf16.mxu0 0
      %386 = vmatmul.mubr.bf16.gmra.mxu0 %v351
      %v387 = vpop.f32.mrf.mxu0
      %v388 = vadd.f32 0.0, %v387
      %v389 = vpop.f32.mrf.mxu0
      %v390 = vpop.f32.mrf.mxu0
      %v391 = vadd.f32 0.0, %v390
      %v392 = vpop.f32.mrf.mxu0
      %393 = vdwg.mxu0
      %v394 = vadd.f32 %v308, %v388
      %v395 = vadd.f32 %v311, %v391
      %v396 = vmax.f32 %v394, 0.0
      %v397 = vmax.f32 %v395, 0.0
      %398 = vst [vmem:[%s143] sm:$0xff] %v396
      %399 = vst [vmem:[%s143 + $0x8] sm:$0xff] %v397
      %p400 = scmp.lt.s32.totalorder %s13, 1
      %s401 = scalar_select %p400, %s13, 1
      %s402 = smul.addr %s401, 2
      %s403 = smul.addr %s402, 8
      %s404 = scalar_lea.vmem %s2, %s403
      // Predicated region
      $region29: #{conv_bn_relu_2d.1} parent=27 // pred_check
        %p405 = pneg %p78
      $region30: #{conv_bn_relu_2d.1} parent=27 // pred_check_branch
        %407 = sbr.rel (%p405) target = $region32
      $region31: #{conv_bn_relu_2d.1} parent=27 // pred_region
        _
      $region32: #{conv_bn_relu_2d.1} parent=27 // pred_fallthru
        _
    $region28: #{conv_bn_relu_2d.1} parent=5 // pred_fallthru
      _
    %p408 = scmp.le.s32.totalorder 2, %s8
    // Predicated region
    $region33: #{conv_bn_relu_2d.1} parent=5 // pred_check
      %p409 = pneg %p408
    $region34: #{conv_bn_relu_2d.1} parent=5 // pred_check_branch
      %411 = sbr.rel (%p409) target = $region36
    $region35: #{conv_bn_relu_2d.1} parent=5 // pred_region
      %s412 = ssub.s32 %s8, 2
      // Predicated region
      $region37: #{conv_bn_relu_2d.1} parent=35 // pred_check
        %p413 = pneg %p84
      $region38: #{conv_bn_relu_2d.1} parent=35 // pred_check_branch
        %415 = sbr.rel (%p413) target = $region40
      $region39: #{conv_bn_relu_2d.1} parent=35 // pred_region
        %p416 = scmp.lt.s32.totalorder %s14, 1
        %s417 = scalar_select %p416, %s14, 1
        %s418 = smul.addr %s417, 2
        %s419 = smul.addr %s418, 8
        %s420 = scalar_lea.vmem %s2, %s419
      $region40: #{conv_bn_relu_2d.1} parent=35 // pred_fallthru
        _
    $region36: #{conv_bn_relu_2d.1} parent=5 // pred_fallthru
      _
  $region6: #{conv_bn_relu_2d.1} parent=0 // loop_footer
    %s12 = sadd.s32 1, %s8
  $region7: #{conv_bn_relu_2d.1} parent=0 // loop_footer_branch
    %7 = sbr.rel target = $region3
  $region8: #{conv_bn_relu_2d.1} parent=0 // loop_exit
    _

</llo_original>
